<compile_context>
chip_gen: v7x
topology: tpu7x:2x2x1
jax: 0.10.0
libtpu: 0.0.40
codegen_flags: <defaults>
</compile_context>

<pallas_src>
import math

import jax
import jax.numpy as jnp
from jax import lax
from jax.experimental import pallas as pl
from jax.experimental.pallas import tpu as pltpu


def make_ann_kernel(tc):
    """Build the kernel for a given column sub-chunk width `tc` (static)."""

    def ann_kernel(xT_ref, w1_ref, b1_ref, w2_ref, b2_ref, w3_ref, b3_ref, oT_ref):
        # Feature-major layout (batch on lanes):
        #   xT: [8,  TB]    w1: [20, 8]   b1: [20, 1]
        #   h1: [20, tc]    w2: [10, 20]  b2: [10, 1]
        #   h2: [10, tc]    w3: [2,  10]  b3: [2,  1]
        #   oT: [2,  TB]
        tb = xT_ref.shape[1]
        n_chunks = tb // tc  # static

        # Tiny weights/biases: load once per grid step (VMEM resident anyway).
        w1 = w1_ref[...]
        b1 = b1_ref[...]
        w2 = w2_ref[...]
        b2 = b2_ref[...]
        w3 = w3_ref[...]
        b3 = b3_ref[...]

        @pl.loop(0, n_chunks)
        def _(c):
            col = pl.multiple_of(c * tc, 128)
            x_c = xT_ref[:, pl.ds(col, tc)]

            h1 = jnp.dot(w1, x_c, preferred_element_type=jnp.float32) + b1
            h1 = jnp.maximum(h1, 0.0)  # f32 epilogue (v5e has no bf16 VPU)

            h2 = jnp.dot(w2, h1.astype(w2.dtype),
                         preferred_element_type=jnp.float32) + b2
            h2 = jnp.maximum(h2, 0.0)

            out = jnp.dot(w3, h2.astype(w3.dtype),
                          preferred_element_type=jnp.float32) + b3
            oT_ref[:, pl.ds(col, tc)] = out.astype(oT_ref.dtype)

    return ann_kernel


def _round_up(n, m):
    return ((n + m - 1) // m) * m


def ann_forward(x, params, *, tb_max=32768, bf16_inputs=True):
    """x: [B, in_features] float32 -> [B, out_features] float32."""
    B, f_in = x.shape
    f_out = params["w3"].shape[0]

    w1, b1 = params["w1"], params["b1"]
    w2, b2 = params["w2"], params["b2"]
    w3, b3 = params["w3"], params["b3"]

    if bf16_inputs:
        # Cast BEFORE the transpose/pad so the wrapper layout pass moves half
        # the bytes.  Biases stay f32 (added after the f32-accumulated dot).
        x = x.astype(jnp.bfloat16)
        w1 = w1.astype(jnp.bfloat16)
        w2 = w2.astype(jnp.bfloat16)
        w3 = w3.astype(jnp.bfloat16)

    # ---- Tiling: batch padded to 128 lanes, batch tile TB, column chunk TC.
    CHUNK = 512
    B_pad = max(_round_up(B, 128), 128)
    if B_pad >= CHUNK:
        B_pad = _round_up(B_pad, CHUNK)

    TB = max(128, (min(int(tb_max), B_pad) // 128) * 128)  # lane-aligned clamp
    if TB >= CHUNK:
        TB = (TB // CHUNK) * CHUNK
        TC = CHUNK
    else:
        TC = TB
    B_pad = _round_up(B_pad, TB)

    # If the whole batch fits in one tile, split it (when it divides evenly)
    # so the "parallel" batch axis can feed both TensorCores on v7x.
    if B_pad // TB == 1 and TB >= 2 * CHUNK:
        tb_half = ((TB // 2) // CHUNK) * CHUNK
        if tb_half >= CHUNK and B_pad % tb_half == 0:
            TB = tb_half

    grid = (B_pad // TB,)

    # ---- Wrapper layout: transpose (batch -> lanes), pad only if needed.
    xT = x.T
    if B_pad != B:
        xT = jnp.pad(xT, ((0, 0), (0, B_pad - B)))

    # ---- VMEM budget: double-buffered x/out tiles + weights + slack,
    #      capped at 48 MiB (safe within v7x's 64 MiB per TensorCore).
    x_bytes = 2 if bf16_inputs else 4
    vmem_need = 2 * 8 * TB * x_bytes + 2 * 8 * TB * 4 + (4 << 20)
    vmem_limit = int(min(48 << 20, max(32 << 20, vmem_need)))

    # Grid-invariant full blocks for the tiny weights/biases: DMA'd once,
    # VMEM-resident across the whole batch loop.
    const = lambda shape: pl.BlockSpec(shape, lambda i: (0, 0))

    oT = pl.pallas_call(
        make_ann_kernel(TC),
        out_shape=jax.ShapeDtypeStruct((f_out, B_pad), jnp.float32),
        grid=grid,
        in_specs=[
            pl.BlockSpec((f_in, TB), lambda i: (0, i)),   # x tile (pipelined)
            const(w1.shape), const(b1.shape),
            const(w2.shape), const(b2.shape),
            const(w3.shape), const(b3.shape),
        ],
        out_specs=pl.BlockSpec((f_out, TB), lambda i: (0, i)),
        compiler_params=pltpu.CompilerParams(
            dimension_semantics=("parallel",),
            vmem_limit_bytes=vmem_limit,
        ),
    )(xT, w1, b1, w2, b2, w3, b3)

    # Layout plumbing back to the PyTorch convention [B, out_features].
    return oT[:, :B].T


def init_params(key, input_features=8, output_features=2):
    """nn.Linear-style U(-1/sqrt(fan_in), 1/sqrt(fan_in)) init.

    Weights are stored PyTorch-style as [out, in]; biases as [out, 1] so they
    broadcast over the lane (batch) axis in the feature-major kernel layout.
    """
    dims = [(20, input_features), (10, 20), (output_features, 10)]
    params = {}
    for i, (fan_out, fan_in) in enumerate(dims, start=1):
        key, wk, bk = jax.random.split(key, 3)
        bound = 1.0 / math.sqrt(fan_in)
        params[f"w{i}"] = jax.random.uniform(
            wk, (fan_out, fan_in), jnp.float32, minval=-bound, maxval=bound)
        params[f"b{i}"] = jax.random.uniform(
            bk, (fan_out, 1), jnp.float32, minval=-bound, maxval=bound)
    return params


def ann_reference(x, params):
    """Plain-JAX reference (PyTorch semantics) for correctness checking."""
    h1 = jnp.maximum(x @ params["w1"].T + params["b1"].T, 0.0)
    h2 = jnp.maximum(h1 @ params["w2"].T + params["b2"].T, 0.0)
    return h2 @ params["w3"].T + params["b3"].T


if __name__ == "__main__":
    key = jax.random.PRNGKey(0)
    key, pkey, xkey, x2key, x3key = jax.random.split(key, 5)

    input_features = 8
    output_features = 2

    params = init_params(pkey, input_features, output_features)

    # 1) Small-batch check, f32 streams (single tile, tight tolerance).
    x = jax.random.normal(xkey, (8, input_features), jnp.float32)
    ref = ann_reference(x, params)
    out_f32 = jax.block_until_ready(ann_forward(x, params, bf16_inputs=False))
    assert out_f32.shape == (8, output_features), out_f32.shape
    assert jnp.allclose(out_f32, ref, atol=1e-4, rtol=1e-4), (
        f"f32 max abs err = {jnp.max(jnp.abs(out_f32 - ref))}")

    # 2) Small-batch check with the default bf16 streams.
    out_bf16 = jax.block_until_ready(ann_forward(x, params))
    assert jnp.allclose(out_bf16, ref, atol=5e-2, rtol=5e-2), (
        f"bf16 max abs err = {jnp.max(jnp.abs(out_bf16 - ref))}")

    # 3) Multi-tile grid check, f32 path (batch not a multiple of the tile;
    #    padding + pipelined batch loop + grid-invariant weight blocks).
    x2 = jax.random.normal(x2key, (300, input_features), jnp.float32)
    out2 = jax.block_until_ready(
        ann_forward(x2, params, tb_max=128, bf16_inputs=False))
    ref2 = ann_reference(x2, params)
    assert out2.shape == (300, output_features), out2.shape
    assert jnp.allclose(out2, ref2, atol=1e-4, rtol=1e-4), (
        f"max abs err = {jnp.max(jnp.abs(out2 - ref2))}")

    # 4) Larger batch, default (bf16) path: exercises the single-tile ->
    #    two-tile megacore split and the in-kernel 512-column chunk loop.
    x3 = jax.random.normal(x3key, (3000, input_features), jnp.float32)
    out3 = jax.block_until_ready(ann_forward(x3, params))
    ref3 = ann_reference(x3, params)
    assert out3.shape == (3000, output_features), out3.shape
    assert jnp.allclose(out3, ref3, atol=5e-2, rtol=5e-2), (
        f"bf16 max abs err = {jnp.max(jnp.abs(out3 - ref3))}")

    print("KERNEL_OK")
</pallas_src>

<mosaic_0001>
module attributes {stable_mosaic.version = 11 : i64} {
  func.func @ann_kernel(%arg0: i32, %arg1: memref<8x128xf32, #tpu.memory_space<vmem>>, %arg2: memref<20x8xf32, #tpu.memory_space<vmem>>, %arg3: memref<20x1xf32, #tpu.memory_space<vmem>>, %arg4: memref<10x20xf32, #tpu.memory_space<vmem>>, %arg5: memref<10x1xf32, #tpu.memory_space<vmem>>, %arg6: memref<2x10xf32, #tpu.memory_space<vmem>>, %arg7: memref<2x1xf32, #tpu.memory_space<vmem>>, %arg8: memref<2x128xf32, #tpu.memory_space<vmem>>) attributes {dimension_semantics = [#tpu.dimension_semantics<parallel>], iteration_bounds = array<i64: 1>, scalar_prefetch = 0 : i64, scratch_operands = 0 : i64, tpu.core_type = #tpu.core_type<tc>, window_params = [{transform_indices = @transform_0, window_bounds = array<i64: 8, 128>}, {pipeline_mode = #tpu.pipeline_mode<synchronous>, transform_indices = @transform_1, window_bounds = array<i64: 20, 8>}, {pipeline_mode = #tpu.pipeline_mode<synchronous>, transform_indices = @transform_2, window_bounds = array<i64: 20, 1>}, {pipeline_mode = #tpu.pipeline_mode<synchronous>, transform_indices = @transform_3, window_bounds = array<i64: 10, 20>}, {pipeline_mode = #tpu.pipeline_mode<synchronous>, transform_indices = @transform_4, window_bounds = array<i64: 10, 1>}, {pipeline_mode = #tpu.pipeline_mode<synchronous>, transform_indices = @transform_5, window_bounds = array<i64: 2, 10>}, {pipeline_mode = #tpu.pipeline_mode<synchronous>, transform_indices = @transform_6, window_bounds = array<i64: 2, 1>}, {transform_indices = @transform_7, window_bounds = array<i64: 2, 128>}]} {
    %c0 = arith.constant 0 : index
    %c0_0 = arith.constant 0 : index
    %0 = vector.load %arg2[%c0, %c0_0] : memref<20x8xf32, #tpu.memory_space<vmem>>, vector<20x8xf32>
    %c0_1 = arith.constant 0 : index
    %c0_2 = arith.constant 0 : index
    %1 = vector.load %arg3[%c0_1, %c0_2] : memref<20x1xf32, #tpu.memory_space<vmem>>, vector<20x1xf32>
    %c0_3 = arith.constant 0 : index
    %c0_4 = arith.constant 0 : index
    %2 = vector.load %arg4[%c0_3, %c0_4] : memref<10x20xf32, #tpu.memory_space<vmem>>, vector<10x20xf32>
    %c0_5 = arith.constant 0 : index
    %c0_6 = arith.constant 0 : index
    %3 = vector.load %arg5[%c0_5, %c0_6] : memref<10x1xf32, #tpu.memory_space<vmem>>, vector<10x1xf32>
    %c0_7 = arith.constant 0 : index
    %c0_8 = arith.constant 0 : index
    %4 = vector.load %arg6[%c0_7, %c0_8] : memref<2x10xf32, #tpu.memory_space<vmem>>, vector<2x10xf32>
    %c0_9 = arith.constant 0 : index
    %c0_10 = arith.constant 0 : index
    %5 = vector.load %arg7[%c0_9, %c0_10] : memref<2x1xf32, #tpu.memory_space<vmem>>, vector<2x1xf32>
    %c0_i32 = arith.constant 0 : i32
    %c1_i32 = arith.constant 1 : i32
    %6 = arith.muli %c0_i32, %c1_i32 : i32
    %c0_i32_11 = arith.constant 0 : i32
    %7 = arith.addi %c0_i32_11, %6 : i32
    %c128_i32 = arith.constant 128 : i32
    %8 = arith.muli %7, %c128_i32 : i32
    %9 = tpu.assume_multiple %8, 128 : i32
    %c0_12 = arith.constant 0 : index
    %10 = arith.index_cast %9 : i32 to index
    %11 = vector.load %arg1[%c0_12, %10] : memref<8x128xf32, #tpu.memory_space<vmem>>, vector<8x128xf32>
    %cst = arith.constant dense<0.000000e+00> : vector<20x128xf32>
    %12 = tpu.matmul %0, %11, %cst {dimension_numbers = #tpu.dot_dimension_numbers<[1], [0], [0], [1], [0, 0, 1, 1], [], []>} : vector<20x8xf32>, vector<8x128xf32>, vector<20x128xf32> -> vector<20x128xf32>
    %13 = vector.broadcast %1 : vector<20x1xf32> to vector<20x128xf32>
    %14 = arith.addf %12, %13 : vector<20x128xf32>
    %cst_13 = arith.constant 0.000000e+00 : f32
    %15 = vector.broadcast %cst_13 : f32 to vector<20x128xf32>
    %16 = arith.maximumf %14, %15 : vector<20x128xf32>
    %cst_14 = arith.constant dense<0.000000e+00> : vector<10x128xf32>
    %17 = tpu.matmul %2, %16, %cst_14 {dimension_numbers = #tpu.dot_dimension_numbers<[1], [0], [0], [1], [0, 0, 1, 1], [], []>} : vector<10x20xf32>, vector<20x128xf32>, vector<10x128xf32> -> vector<10x128xf32>
    %18 = vector.broadcast %3 : vector<10x1xf32> to vector<10x128xf32>
    %19 = arith.addf %17, %18 : vector<10x128xf32>
    %cst_15 = arith.constant 0.000000e+00 : f32
    %20 = vector.broadcast %cst_15 : f32 to vector<10x128xf32>
    %21 = arith.maximumf %19, %20 : vector<10x128xf32>
    %cst_16 = arith.constant dense<0.000000e+00> : vector<2x128xf32>
    %22 = tpu.matmul %4, %21, %cst_16 {dimension_numbers = #tpu.dot_dimension_numbers<[1], [0], [0], [1], [0, 0, 1, 1], [], []>} : vector<2x10xf32>, vector<10x128xf32>, vector<2x128xf32> -> vector<2x128xf32>
    %23 = vector.broadcast %5 : vector<2x1xf32> to vector<2x128xf32>
    %24 = arith.addf %22, %23 : vector<2x128xf32>
    %c0_17 = arith.constant 0 : index
    %25 = arith.index_cast %9 : i32 to index
    %26 = vector.load %arg8[%c0_17, %25] : memref<2x128xf32, #tpu.memory_space<vmem>>, vector<2x128xf32>
    tpu.vector_store %arg8[%c0_17, %25], %24 {strides = array<i32>} : memref<2x128xf32, #tpu.memory_space<vmem>>, vector<2x128xf32>,
    %c1_i32_18 = arith.constant 1 : i32
    return
  }
  func.func @transform_0(%arg0: i32) -> (i32, i32) {
    %c0_i32 = arith.constant 0 : i32
    %c0_i32_0 = arith.constant 0 : i32
    return %c0_i32, %arg0 : i32, i32
  }
  func.func @transform_1(%arg0: i32) -> (i32, i32) {
    %c0_i32 = arith.constant 0 : i32
    %c0_i32_0 = arith.constant 0 : i32
    %c0_i32_1 = arith.constant 0 : i32
    return %c0_i32, %c0_i32_0 : i32, i32
  }
  func.func @transform_2(%arg0: i32) -> (i32, i32) {
    %c0_i32 = arith.constant 0 : i32
    %c0_i32_0 = arith.constant 0 : i32
    %c0_i32_1 = arith.constant 0 : i32
    return %c0_i32, %c0_i32_0 : i32, i32
  }
  func.func @transform_3(%arg0: i32) -> (i32, i32) {
    %c0_i32 = arith.constant 0 : i32
    %c0_i32_0 = arith.constant 0 : i32
    %c0_i32_1 = arith.constant 0 : i32
    return %c0_i32, %c0_i32_0 : i32, i32
  }
  func.func @transform_4(%arg0: i32) -> (i32, i32) {
    %c0_i32 = arith.constant 0 : i32
    %c0_i32_0 = arith.constant 0 : i32
    %c0_i32_1 = arith.constant 0 : i32
    return %c0_i32, %c0_i32_0 : i32, i32
  }
  func.func @transform_5(%arg0: i32) -> (i32, i32) {
    %c0_i32 = arith.constant 0 : i32
    %c0_i32_0 = arith.constant 0 : i32
    %c0_i32_1 = arith.constant 0 : i32
    return %c0_i32, %c0_i32_0 : i32, i32
  }
  func.func @transform_6(%arg0: i32) -> (i32, i32) {
    %c0_i32 = arith.constant 0 : i32
    %c0_i32_0 = arith.constant 0 : i32
    %c0_i32_1 = arith.constant 0 : i32
    return %c0_i32, %c0_i32_0 : i32, i32
  }
  func.func @transform_7(%arg0: i32) -> (i32, i32) {
    %c0_i32 = arith.constant 0 : i32
    %c0_i32_0 = arith.constant 0 : i32
    return %c0_i32, %arg0 : i32, i32
  }
}

</mosaic_0001>

<llo_original>
// kernel: tpu_custom_call.1
$region0: #{tpu_custom_call.1}
  #allocation0 [shape = 'u32[]', space=smem, size = 0x4, offset = 0x4, fixed_abs, tag = 'smem constant byte address 0x4 - core index']
  #allocation1 [shape = 'u32[144,128]{1,0:T(1,128)}', space=vmem, size = 0x12000, scoped, tag = 'internal scratch']
  %s0 = inlined_call_operand.vmem [shape: f32[8,128], index: 0, kind: input, shape index: {}]
  %s1 = inlined_call_operand.vmem [shape: f32[20,8], index: 1, kind: input, shape index: {}]
  %s2 = inlined_call_operand.vmem [shape: f32[20,1], index: 2, kind: input, shape index: {}]
  %s3 = inlined_call_operand.vmem [shape: f32[10,20], index: 3, kind: input, shape index: {}]
  %s4 = inlined_call_operand.vmem [shape: f32[10,1], index: 4, kind: input, shape index: {}]
  %s5 = inlined_call_operand.vmem [shape: f32[2,10], index: 5, kind: input, shape index: {}]
  %s6 = inlined_call_operand.vmem [shape: f32[2,1], index: 6, kind: input, shape index: {}]
  %s7 = inlined_call_operand.hbm [shape: f32[2,128], index: 7, kind: output, shape index: {}]
  %s8 = sld [smem:[#allocation0]]
  $region38: #{tpu_custom_call.1} parent=0
    _
  %s10 = ssub.s32 1, %s8
  %s11 = scalar_select 0, %s10, %s8
  $region1: #{tpu_custom_call.1} parent=0
    #allocation2 [shape = 'u8[1024]{0}', space=vmem, size = 0x400, scoped, tag = 'output window, operand 0, single buffered']
    #allocation3 [shape = 's32[1]{0}', space=sflag, size = 0x4, scoped, tag = 'scoped memory for tpu_custom_call.1']
    %12 = vsyncpa [#allocation3], 0
    // Predicated region
    $region2: #{tpu_custom_call.1} parent=1 // pred_check
      _
    $region3: #{tpu_custom_call.1} parent=1 // pred_check_branch
      %14 = sbr.rel (0) target = $region5
    $region4: #{tpu_custom_call.1} parent=1 // pred_region
      _
    $region5: #{tpu_custom_call.1} parent=1 // pred_fallthru
      _
    // Predicated region
    $region6: #{tpu_custom_call.1} parent=1 // pred_check
      _
    $region7: #{tpu_custom_call.1} parent=1 // pred_check_branch
      %16 = sbr.rel (0) target = $region9
    $region8: #{tpu_custom_call.1} parent=1 // pred_region
      _
    $region9: #{tpu_custom_call.1} parent=1 // pred_fallthru
      _
    // Predicated region
    $region10: #{tpu_custom_call.1} parent=1 // pred_check
      _
    $region11: #{tpu_custom_call.1} parent=1 // pred_check_branch
      %18 = sbr.rel (0) target = $region13
    $region12: #{tpu_custom_call.1} parent=1 // pred_region
      _
    $region13: #{tpu_custom_call.1} parent=1 // pred_fallthru
      _
    // Predicated region
    $region14: #{tpu_custom_call.1} parent=1 // pred_check
      _
    $region15: #{tpu_custom_call.1} parent=1 // pred_check_branch
      %20 = sbr.rel (0) target = $region17
    $region16: #{tpu_custom_call.1} parent=1 // pred_region
      _
    $region17: #{tpu_custom_call.1} parent=1 // pred_fallthru
      _
    // Predicated region
    $region18: #{tpu_custom_call.1} parent=1 // pred_check
      _
    $region19: #{tpu_custom_call.1} parent=1 // pred_check_branch
      %22 = sbr.rel (0) target = $region21
    $region20: #{tpu_custom_call.1} parent=1 // pred_region
      _
    $region21: #{tpu_custom_call.1} parent=1 // pred_fallthru
      _
    // Predicated region
    $region22: #{tpu_custom_call.1} parent=1 // pred_check
      _
    $region23: #{tpu_custom_call.1} parent=1 // pred_check_branch
      %24 = sbr.rel (0) target = $region25
    $region24: #{tpu_custom_call.1} parent=1 // pred_region
      _
    $region25: #{tpu_custom_call.1} parent=1 // pred_fallthru
      _
    // Predicated region
    $region26: #{tpu_custom_call.1} parent=1 // pred_check
      _
    $region27: #{tpu_custom_call.1} parent=1 // pred_check_branch
      %26 = sbr.rel (0) target = $region29
    $region28: #{tpu_custom_call.1} parent=1 // pred_region
      _
    $region29: #{tpu_custom_call.1} parent=1 // pred_fallthru
      _
    %v27 = vld [vmem:[%s1] sm:$0xff]
    %v28 = vld [vmem:[%s1 + $0x8] sm:$0xff]
    %v29 = vld [vmem:[%s1 + $0x10] sm:$0xf]
    %v30 = vld [vmem:[%s2] sm:$0xff]
    %v31 = vld [vmem:[%s2 + $0x8] sm:$0xff]
    %v32 = vld [vmem:[%s2 + $0x10] sm:$0xf]
    %v33 = vld [vmem:[%s3] sm:$0xff]
    %v34 = vld [vmem:[%s3 + $0x8] sm:$0x3]
    %v35 = vld [vmem:[%s4] sm:$0xff]
    %v36 = vld [vmem:[%s4 + $0x8] sm:$0x3]
    %v37 = vld [vmem:[%s5] sm:$0x3]
    %v38 = vld [vmem:[%s6] sm:$0x3]
    %v39 = vld [vmem:[%s0] sm:$0xff]
    %41 = vset.pattern.permute.xlu0 0
    %42 = vperm.xlu0 %41, %v30
    %v43 = vpop.permute.xlu0 %42
    %46 = vset.pattern.permute.xlu0 0
    %47 = vperm.xlu0 %46, %v31
    %v48 = vpop.permute.xlu0 %47
    %51 = vset.pattern.permute.xlu0 0
    %52 = vperm.xlu0 %51, %v32
    %v53 = vpop.permute.xlu0 %52
    %vm55 = vcmask 64512
    %v57 = vsel %vm55, %v27, 0
    %v60 = vsel %vm55, %v28, 0
    %v63 = vsel %vm55, %v29, 0
    %65 = vmatprep.subr.mxu0 0.0
    %66 = vmatpush1.msra.mxu0 %v39
    %67 = vmatprep.subr.mxu0 0.0
    %68 = vmatpush1.msra.mxu0 0.0
    %69 = vmatprep.subr.mxu0 0.0
    %70 = vmatpush1.msra.mxu0 0.0
    %71 = vmatprep.subr.mxu0 0.0
    %72 = vmatpush1.msra.mxu0 0.0
    %73 = vmatprep.subr.mxu0 0.0
    %74 = vmatpush1.msra.mxu0 0.0
    %75 = vmatprep.subr.mxu0 0.0
    %76 = vmatpush1.msra.mxu0 0.0
    %77 = vmatprep.subr.mxu0 0.0
    %78 = vmatpush1.msra.mxu0 0.0
    %79 = vmatprep.subr.mxu0 0.0
    %80 = vmatpush1.msra.mxu0 0.0
    %81 = vmatprep.subr.mxu0 0.0
    %82 = vmatpush1.msra.mxu0 0.0
    %83 = vmatprep.subr.mxu0 0.0
    %84 = vmatpush1.msra.mxu0 0.0
    %85 = vmatprep.subr.mxu0 0.0
    %86 = vmatpush1.msra.mxu0 0.0
    %87 = vmatprep.subr.mxu0 0.0
    %88 = vmatpush1.msra.mxu0 0.0
    %89 = vmatprep.subr.mxu0 0.0
    %90 = vmatpush1.msra.mxu0 0.0
    %91 = vmatprep.subr.mxu0 0.0
    %92 = vmatpush1.msra.mxu0 0.0
    %93 = vmatprep.subr.mxu0 0.0
    %94 = vmatpush1.msra.mxu0 0.0
    %95 = vmatprep.subr.mxu0 0.0
    %96 = vmatpush1.msra.mxu0 0.0
    %97 = vmatprep.subr.mxu0 0.0
    %98 = vmatpush1.msra.mxu0 0.0
    %99 = vmatprep.subr.mxu0 0.0
    %100 = vmatpush1.msra.mxu0 0.0
    %101 = vmatprep.subr.mxu0 0.0
    %102 = vmatpush1.msra.mxu0 0.0
    %103 = vmatprep.subr.mxu0 0.0
    %104 = vmatpush1.msra.mxu0 0.0
    %105 = vmatprep.subr.mxu0 0.0
    %106 = vmatpush1.msra.mxu0 0.0
    %107 = vmatprep.subr.mxu0 0.0
    %108 = vmatpush1.msra.mxu0 0.0
    %109 = vmatprep.subr.mxu0 0.0
    %110 = vmatpush1.msra.mxu0 0.0
    %111 = vmatprep.subr.mxu0 0.0
    %112 = vmatpush1.msra.mxu0 0.0
    %113 = vmatprep.subr.mxu0 0.0
    %114 = vmatpush1.msra.mxu0 0.0
    %115 = vmatprep.subr.mxu0 0.0
    %116 = vmatpush1.msra.mxu0 0.0
    %117 = vmatprep.subr.mxu0 0.0
    %118 = vmatpush1.msra.mxu0 0.0
    %119 = vmatprep.subr.mxu0 0.0
    %120 = vmatpush1.msra.mxu0 0.0
    %121 = vmatprep.subr.mxu0 0.0
    %122 = vmatpush1.msra.mxu0 0.0
    %123 = vmatprep.subr.mxu0 0.0
    %124 = vmatpush1.msra.mxu0 0.0
    %125 = vmatprep.subr.mxu0 0.0
    %126 = vmatpush1.msra.mxu0 0.0
    %127 = vmatprep.subr.mxu0 0.0
    %128 = vmatpush1.msra.mxu0 0.0
    %129 = vmatprep.mubr.f32.mxu0 0.0
    %130 = vmatmul.mubr.f32.gmra.mrb[0].mxu0 %v57
    %v131 = vpop.f32.mrb[0].mxu0
    %v132 = vadd.f32 %v43, %v131
    %v133 = vpop.f32.mrb[0].mxu0
    %134 = vmatprep.mubr.f32.mxu0 0.0
    %135 = vmatmul.mubr.f32.gmra.mrb[0].mxu0 %v60
    %v136 = vpop.f32.mrb[0].mxu0
    %v137 = vadd.f32 %v48, %v136
    %v138 = vpop.f32.mrb[0].mxu0
    %139 = vmatprep.mubr.f32.mxu0 0.0
    %140 = vmatmul.mubr.f32.gmra.mrb[0].mxu0 %v63
    %v141 = vpop.f32.mrb[0].mxu0
    %v142 = vadd.f32 %v53, %v141
    %v143 = vpop.f32.mrb[0].mxu0
    %144 = vdwg.mxu0
    %v145 = vmax.f32 %v132, 0.0
    %v146 = vmax.f32 %v137, 0.0
    %v147 = vmax.f32 %v142, 0.0
    %149 = vset.pattern.permute.xlu0 0
    %150 = vperm.xlu0 %149, %v35
    %v151 = vpop.permute.xlu0 %150
    %154 = vset.pattern.permute.xlu0 0
    %155 = vperm.xlu0 %154, %v36
    %v156 = vpop.permute.xlu0 %155
    %vm158 = vcmask 162816
    %v160 = vsel %vm158, %v33, 0
    %v163 = vsel %vm158, %v34, 0
    %vm165 = vcmask 1043456
    %v167 = vsel %vm165, %v147, 0
    %169 = vmatprep.subr.mxu0 0.0
    %170 = vmatpush1.msra.mxu0 %v145
    %171 = vmatprep.subr.mxu0 0.0
    %172 = vmatpush1.msra.mxu0 %v146
    %173 = vmatprep.subr.mxu0 0.0
    %174 = vmatpush1.msra.mxu0 %v167
    %175 = vmatprep.subr.mxu0 0.0
    %176 = vmatpush1.msra.mxu0 0.0
    %177 = vmatprep.subr.mxu0 0.0
    %178 = vmatpush1.msra.mxu0 0.0
    %179 = vmatprep.subr.mxu0 0.0
    %180 = vmatpush1.msra.mxu0 0.0
    %181 = vmatprep.subr.mxu0 0.0
    %182 = vmatpush1.msra.mxu0 0.0
    %183 = vmatprep.subr.mxu0 0.0
    %184 = vmatpush1.msra.mxu0 0.0
    %185 = vmatprep.subr.mxu0 0.0
    %186 = vmatpush1.msra.mxu0 0.0
    %187 = vmatprep.subr.mxu0 0.0
    %188 = vmatpush1.msra.mxu0 0.0
    %189 = vmatprep.subr.mxu0 0.0
    %190 = vmatpush1.msra.mxu0 0.0
    %191 = vmatprep.subr.mxu0 0.0
    %192 = vmatpush1.msra.mxu0 0.0
    %193 = vmatprep.subr.mxu0 0.0
    %194 = vmatpush1.msra.mxu0 0.0
    %195 = vmatprep.subr.mxu0 0.0
    %196 = vmatpush1.msra.mxu0 0.0
    %197 = vmatprep.subr.mxu0 0.0
    %198 = vmatpush1.msra.mxu0 0.0
    %199 = vmatprep.subr.mxu0 0.0
    %200 = vmatpush1.msra.mxu0 0.0
    %201 = vmatprep.subr.mxu0 0.0
    %202 = vmatpush1.msra.mxu0 0.0
    %203 = vmatprep.subr.mxu0 0.0
    %204 = vmatpush1.msra.mxu0 0.0
    %205 = vmatprep.subr.mxu0 0.0
    %206 = vmatpush1.msra.mxu0 0.0
    %207 = vmatprep.subr.mxu0 0.0
    %208 = vmatpush1.msra.mxu0 0.0
    %209 = vmatprep.subr.mxu0 0.0
    %210 = vmatpush1.msra.mxu0 0.0
    %211 = vmatprep.subr.mxu0 0.0
    %212 = vmatpush1.msra.mxu0 0.0
    %213 = vmatprep.subr.mxu0 0.0
    %214 = vmatpush1.msra.mxu0 0.0
    %215 = vmatprep.subr.mxu0 0.0
    %216 = vmatpush1.msra.mxu0 0.0
    %217 = vmatprep.subr.mxu0 0.0
    %218 = vmatpush1.msra.mxu0 0.0
    %219 = vmatprep.subr.mxu0 0.0
    %220 = vmatpush1.msra.mxu0 0.0
    %221 = vmatprep.subr.mxu0 0.0
    %222 = vmatpush1.msra.mxu0 0.0
    %223 = vmatprep.subr.mxu0 0.0
    %224 = vmatpush1.msra.mxu0 0.0
    %225 = vmatprep.subr.mxu0 0.0
    %226 = vmatpush1.msra.mxu0 0.0
    %227 = vmatprep.subr.mxu0 0.0
    %228 = vmatpush1.msra.mxu0 0.0
    %229 = vmatprep.subr.mxu0 0.0
    %230 = vmatpush1.msra.mxu0 0.0
    %231 = vmatprep.subr.mxu0 0.0
    %232 = vmatpush1.msra.mxu0 0.0
    %233 = vmatprep.mubr.f32.mxu0 0.0
    %234 = vmatmul.mubr.f32.gmra.mrb[0].mxu0 %v160
    %v235 = vpop.f32.mrb[0].mxu0
    %v236 = vadd.f32 %v151, %v235
    %v237 = vpop.f32.mrb[0].mxu0
    %238 = vmatprep.mubr.f32.mxu0 0.0
    %239 = vmatmul.mubr.f32.gmra.mrb[0].mxu0 %v163
    %v240 = vpop.f32.mrb[0].mxu0
    %v241 = vadd.f32 %v156, %v240
    %v242 = vpop.f32.mrb[0].mxu0
    %243 = vdwg.mxu0
    %v244 = vmax.f32 %v236, 0.0
    %v245 = vmax.f32 %v241, 0.0
    %247 = vset.pattern.permute.xlu0 0
    %248 = vperm.xlu0 %247, %v38
    %v249 = vpop.permute.xlu0 %248
    %vm251 = vcmask 80896
    %v253 = vsel %vm251, %v37, 0
    %vm255 = vcmask 1041408
    %v257 = vsel %vm255, %v245, 0
    %259 = vmatprep.subr.mxu0 0.0
    %260 = vmatpush1.msra.mxu0 %v244
    %261 = vmatprep.subr.mxu0 0.0
    %262 = vmatpush1.msra.mxu0 %v257
    %263 = vmatprep.subr.mxu0 0.0
    %264 = vmatpush1.msra.mxu0 0.0
    %265 = vmatprep.subr.mxu0 0.0
    %266 = vmatpush1.msra.mxu0 0.0
    %267 = vmatprep.subr.mxu0 0.0
    %268 = vmatpush1.msra.mxu0 0.0
    %269 = vmatprep.subr.mxu0 0.0
    %270 = vmatpush1.msra.mxu0 0.0
    %271 = vmatprep.subr.mxu0 0.0
    %272 = vmatpush1.msra.mxu0 0.0
    %273 = vmatprep.subr.mxu0 0.0
    %274 = vmatpush1.msra.mxu0 0.0
    %275 = vmatprep.subr.mxu0 0.0
    %276 = vmatpush1.msra.mxu0 0.0
    %277 = vmatprep.subr.mxu0 0.0
    %278 = vmatpush1.msra.mxu0 0.0
    %279 = vmatprep.subr.mxu0 0.0
    %280 = vmatpush1.msra.mxu0 0.0
    %281 = vmatprep.subr.mxu0 0.0
    %282 = vmatpush1.msra.mxu0 0.0
    %283 = vmatprep.subr.mxu0 0.0
    %284 = vmatpush1.msra.mxu0 0.0
    %285 = vmatprep.subr.mxu0 0.0
    %286 = vmatpush1.msra.mxu0 0.0
    %287 = vmatprep.subr.mxu0 0.0
    %288 = vmatpush1.msra.mxu0 0.0
    %289 = vmatprep.subr.mxu0 0.0
    %290 = vmatpush1.msra.mxu0 0.0
    %291 = vmatprep.subr.mxu0 0.0
    %292 = vmatpush1.msra.mxu0 0.0
    %293 = vmatprep.subr.mxu0 0.0
    %294 = vmatpush1.msra.mxu0 0.0
    %295 = vmatprep.subr.mxu0 0.0
    %296 = vmatpush1.msra.mxu0 0.0
    %297 = vmatprep.subr.mxu0 0.0
    %298 = vmatpush1.msra.mxu0 0.0
    %299 = vmatprep.subr.mxu0 0.0
    %300 = vmatpush1.msra.mxu0 0.0
    %301 = vmatprep.subr.mxu0 0.0
    %302 = vmatpush1.msra.mxu0 0.0
    %303 = vmatprep.subr.mxu0 0.0
    %304 = vmatpush1.msra.mxu0 0.0
    %305 = vmatprep.subr.mxu0 0.0
    %306 = vmatpush1.msra.mxu0 0.0
    %307 = vmatprep.subr.mxu0 0.0
    %308 = vmatpush1.msra.mxu0 0.0
    %309 = vmatprep.subr.mxu0 0.0
    %310 = vmatpush1.msra.mxu0 0.0
    %311 = vmatprep.subr.mxu0 0.0
    %312 = vmatpush1.msra.mxu0 0.0
    %313 = vmatprep.subr.mxu0 0.0
    %314 = vmatpush1.msra.mxu0 0.0
    %315 = vmatprep.subr.mxu0 0.0
    %316 = vmatpush1.msra.mxu0 0.0
    %317 = vmatprep.subr.mxu0 0.0
    %318 = vmatpush1.msra.mxu0 0.0
    %319 = vmatprep.subr.mxu0 0.0
    %320 = vmatpush1.msra.mxu0 0.0
    %321 = vmatprep.subr.mxu0 0.0
    %322 = vmatpush1.msra.mxu0 0.0
    %323 = vmatprep.mubr.f32.mxu0 0.0
    %324 = vmatmul.mubr.f32.gmra.mrb[0].mxu0 %v253
    %v325 = vpop.f32.mrb[0].mxu0
    %v326 = vadd.f32 %v249, %v325
    %v327 = vpop.f32.mrb[0].mxu0
    %328 = vdwg.mxu0
    %329 = vst [vmem:[#allocation2] sm:$0x3] %v326
    // Predicated region
    $region30: #{tpu_custom_call.1} parent=1 // pred_check
      _
    $region31: #{tpu_custom_call.1} parent=1 // pred_check_branch
      %331 = sbr.rel (0) target = $region33
    $region32: #{tpu_custom_call.1} parent=1 // pred_region
      %s333 = ssub.s32 32, 32
      %334 = vsyncadd [#allocation3], %s333
      %s336 = sshll.u32 [#allocation2], 4
      %s337 = int_to_ptr.vmem [resolvable:$true] %s336
      %339 = dma.vmem_to_hbm [thread:$0]  %s337, 32, %s7, [#allocation3]
    $region33: #{tpu_custom_call.1} parent=1 // pred_fallthru
      _
    // Predicated region
    $region34: #{tpu_custom_call.1} parent=1 // pred_check
      _
    $region35: #{tpu_custom_call.1} parent=1 // pred_check_branch
      %341 = sbr.rel (0) target = $region37
    $region36: #{tpu_custom_call.1} parent=1 // pred_region
      %342 = dma.done [#allocation3], 32
    $region37: #{tpu_custom_call.1} parent=1 // pred_fallthru
      _
    %343 = vsyncpa [#allocation3], 1

</llo_original>
